<compile_context>
chip_gen: v7x
topology: tpu7x:2x2x1
jax: 0.10.0
libtpu: 0.0.40
codegen_flags: <defaults>
</compile_context>

<pallas_src>
import jax
import jax.numpy as jnp
from jax.experimental import pallas as pl
from jax.experimental.pallas import tpu as pltpu

_LANE = 128
_PAIR = 2 * _LANE            # 256 interleaved lanes per row = 128 batch elements
_MAX_BLOCK_ROWS = 2048       # 2048 rows * 128 batch/row = 256K batch elems per grid step


def _round_up(a: int, b: int) -> int:
    return ((a + b - 1) // b) * b


def linear_sigmoid_kernel(p_ref, x_ref, o_ref):
    # p_ref: SMEM f32[3] = [w0, w1, bias]  (scalar path)
    # x_ref: VMEM (TR, 256) f32 -- natural row-major x, lanes interleaved f0,f1,...
    # o_ref: VMEM (TR, 128) f32 -- lane-dense, batch-ordered outputs
    w0 = p_ref[0]
    w1 = p_ref[1]
    b = p_ref[2]

    x = x_ref[...]                                             # (TR, 256)

    # Exact f32 VPU: even lanes (feature 0) * w0, odd lanes (feature 1) * w1.
    lane = jax.lax.broadcasted_iota(jnp.int32, (1, _PAIR), 1)
    w_par = jnp.where(lane % 2 == 0, w0, w1)                   # (1, 256)
    z = x * w_par                                              # (TR, 256)

    # Pairwise sum + even-lane compaction via a structured 0/1 matmul on the MXU:
    # (z @ P)[:, k] = z[:, 2k] + z[:, 2k+1]  ->  dense (TR, 128) output tile.
    row = jax.lax.broadcasted_iota(jnp.int32, (_PAIR, _LANE), 0)
    col = jax.lax.broadcasted_iota(jnp.int32, (_PAIR, _LANE), 1)
    p_mat = jnp.where((row == 2 * col) | (row == 2 * col + 1),
                      jnp.float32(1.0), jnp.float32(0.0))      # (256, 128) exact 0/1

    # Keep the matmul f32-accurate even under bf16 operand rounding:
    # z_hi is exactly bf16-representable, the residual is ~2^-9 smaller.
    z_hi = z.astype(jnp.bfloat16).astype(jnp.float32)
    z_lo = z - z_hi
    acc = (jnp.dot(z_hi, p_mat, preferred_element_type=jnp.float32)
           + jnp.dot(z_lo, p_mat, preferred_element_type=jnp.float32))   # (TR, 128)

    o_ref[...] = jax.nn.sigmoid(acc + b).astype(o_ref.dtype)


def net_forward(x, w, b):
    """sigmoid(x @ W^T + b) for W of shape (1, 2), b of shape (1,).

    x: (B, 2) float32  ->  returns (B, 1) float32.
    """
    B, in_features = x.shape
    assert in_features == 2 and w.shape == (1, 2) and b.shape == (1,)

    x = x.astype(jnp.float32)

    # Pad batch only to a lane multiple (8-row floor so the matmul always sees
    # >= 8 sublanes).  For B a multiple of 128 (and >= 1024) this is a no-op and
    # the (R, 256) view below is a free, contiguous reshape -- no extra HBM pass.
    Bp = max(_round_up(B, _LANE), 8 * _LANE)
    if Bp != B:
        x = jnp.pad(x, ((0, Bp - B), (0, 0)))
    R = Bp // _LANE                                            # rows of 128 batch elems
    xi = x.reshape(R, _PAIR)                                   # (R, 256), free reshape

    # Row block: large enough to amortize per-step overhead, VMEM-safe, and split
    # so the "parallel" grid has >= 2 steps for v7x's two TensorCores.
    if R <= 8:
        block_rows = R
    else:
        block_rows = min(_MAX_BLOCK_ROWS, _round_up(pl.cdiv(R, 2), 8))
    grid = (pl.cdiv(R, block_rows),)

    # [w0, w1, bias] travel as SMEM scalars via scalar prefetch.
    params = jnp.concatenate([w.reshape(-1), b.reshape(-1)]).astype(jnp.float32)

    out = pl.pallas_call(
        linear_sigmoid_kernel,
        out_shape=jax.ShapeDtypeStruct((R, _LANE), jnp.float32),
        grid_spec=pltpu.PrefetchScalarGridSpec(
            num_scalar_prefetch=1,
            grid=grid,
            in_specs=[pl.BlockSpec((block_rows, _PAIR), lambda i, p: (i, 0))],
            out_specs=pl.BlockSpec((block_rows, _LANE), lambda i, p: (i, 0)),
        ),
        compiler_params=pltpu.CompilerParams(
            dimension_semantics=("parallel",),
            vmem_limit_bytes=32 * 1024 * 1024,
        ),
    )(params, xi)

    # (R, 128) is already in batch order: free reshape, then drop padding.
    return out.reshape(Bp)[:B].reshape(B, 1)


if __name__ == "__main__":
    key = jax.random.PRNGKey(0)
    kx, kw, kb = jax.random.split(key, 3)

    B = 8
    x = jax.random.normal(kx, (B, 2), dtype=jnp.float32)

    # Deterministic params mirroring nn.Linear(2, 1): weight (1, 2), bias (1,)
    bound = 1.0 / jnp.sqrt(2.0)
    w = jax.random.uniform(kw, (1, 2), minval=-bound, maxval=bound, dtype=jnp.float32)
    b = jax.random.uniform(kb, (1,), minval=-bound, maxval=bound, dtype=jnp.float32)

    out = jax.jit(net_forward)(x, w, b)
    jax.block_until_ready(out)

    # Exact element-wise reference (avoids XLA's default low-precision matmul).
    ref = jax.nn.sigmoid(x[:, 0:1] * w[0, 0] + x[:, 1:2] * w[0, 1] + b[0])
    assert out.shape == (B, 1)
    assert jnp.allclose(out, ref, atol=1e-5, rtol=1e-5), "mismatch vs reference"

    print("KERNEL_OK")
</pallas_src>

<mosaic_0001>
module attributes {stable_mosaic.version = 11 : i64} {
  func.func @linear_sigmoid_kernel(%arg0: i32, %arg1: memref<3xf32, #tpu.memory_space<smem>>, %arg2: memref<8x256xf32, #tpu.memory_space<vmem>>, %arg3: memref<8x128xf32, #tpu.memory_space<vmem>>) attributes {dimension_semantics = [#tpu.dimension_semantics<parallel>], iteration_bounds = array<i64: 1>, scalar_prefetch = 1 : i64, scratch_operands = 0 : i64, tpu.core_type = #tpu.core_type<tc>, window_params = [{transform_indices = @transform_0, window_bounds = array<i64: 8, 256>}, {transform_indices = @transform_1, window_bounds = array<i64: 8, 128>}]} {
    %c0 = arith.constant 0 : index
    %0 = memref.load %arg1[%c0] : memref<3xf32, #tpu.memory_space<smem>>
    %c1 = arith.constant 1 : index
    %1 = memref.load %arg1[%c1] : memref<3xf32, #tpu.memory_space<smem>>
    %c2 = arith.constant 2 : index
    %2 = memref.load %arg1[%c2] : memref<3xf32, #tpu.memory_space<smem>>
    %c0_0 = arith.constant 0 : index
    %c0_1 = arith.constant 0 : index
    %3 = vector.load %arg2[%c0_0, %c0_1] : memref<8x256xf32, #tpu.memory_space<vmem>>, vector<8x256xf32>
    %4 = tpu.iota {dimensions = array<i32: 1>} : vector<1x256xi32>
    %c2_i32 = arith.constant 2 : i32
    %c0_i32 = arith.constant 0 : i32
    %5 = arith.cmpi eq, %c2_i32, %c0_i32 : i32
    %c1_i32 = arith.constant 1 : i32
    %6 = arith.select %5, %c1_i32, %c2_i32 : i32
    %7 = vector.broadcast %6 : i32 to vector<1x256xi32>
    %8 = arith.remsi %4, %7 : vector<1x256xi32>
    %c0_i32_2 = arith.constant 0 : i32
    %9 = vector.broadcast %c0_i32_2 : i32 to vector<1x256xi32>
    %10 = arith.cmpi ne, %8, %9 : vector<1x256xi32>
    %c0_i32_3 = arith.constant 0 : i32
    %11 = vector.broadcast %c0_i32_3 : i32 to vector<1x256xi32>
    %12 = arith.cmpi slt, %8, %11 : vector<1x256xi32>
    %c0_i32_4 = arith.constant 0 : i32
    %13 = arith.cmpi slt, %6, %c0_i32_4 : i32
    %14 = vector.broadcast %13 : i1 to vector<1x256xi1>
    %15 = vector.broadcast %14 : vector<1x256xi1> to vector<1x256xi1>
    %16 = arith.xori %12, %15 : vector<1x256xi1>
    %17 = arith.andi %16, %10 : vector<1x256xi1>
    %18 = vector.broadcast %6 : i32 to vector<1x256xi32>
    %19 = arith.addi %8, %18 : vector<1x256xi32>
    %20 = arith.select %17, %19, %8 : vector<1x256xi1>, vector<1x256xi32>
    %c0_i32_5 = arith.constant 0 : i32
    %21 = vector.broadcast %c0_i32_5 : i32 to vector<1x256xi32>
    %22 = arith.cmpi eq, %20, %21 : vector<1x256xi32>
    %23 = vector.broadcast %0 : f32 to vector<1x256xf32>
    %24 = vector.broadcast %1 : f32 to vector<1x256xf32>
    %25 = arith.select %22, %23, %24 : vector<1x256xi1>, vector<1x256xf32>
    %26 = vector.broadcast %25 : vector<1x256xf32> to vector<8x256xf32>
    %27 = arith.mulf %3, %26 : vector<8x256xf32>
    %28 = tpu.iota {dimensions = array<i32: 0>} : vector<256x128xi32>
    %29 = tpu.iota {dimensions = array<i32: 1>} : vector<256x128xi32>
    %c2_i32_6 = arith.constant 2 : i32
    %30 = vector.broadcast %c2_i32_6 : i32 to vector<256x128xi32>
    %31 = arith.muli %30, %29 : vector<256x128xi32>
    %32 = arith.cmpi eq, %28, %31 : vector<256x128xi32>
    %c2_i32_7 = arith.constant 2 : i32
    %33 = vector.broadcast %c2_i32_7 : i32 to vector<256x128xi32>
    %34 = arith.muli %33, %29 : vector<256x128xi32>
    %c1_i32_8 = arith.constant 1 : i32
    %35 = vector.broadcast %c1_i32_8 : i32 to vector<256x128xi32>
    %36 = arith.addi %34, %35 : vector<256x128xi32>
    %37 = arith.cmpi eq, %28, %36 : vector<256x128xi32>
    %38 = arith.ori %32, %37 : vector<256x128xi1>
    %cst = arith.constant 1.000000e+00 : f32
    %cst_9 = arith.constant 0.000000e+00 : f32
    %39 = vector.broadcast %cst : f32 to vector<256x128xf32>
    %40 = vector.broadcast %cst_9 : f32 to vector<256x128xf32>
    %41 = arith.select %38, %39, %40 : vector<256x128xi1>, vector<256x128xf32>
    %42 = arith.truncf %27 : vector<8x256xf32> to vector<8x256xbf16>
    %43 = arith.extf %42 : vector<8x256xbf16> to vector<8x256xf32>
    %44 = arith.subf %27, %43 : vector<8x256xf32>
    %cst_10 = arith.constant dense<0.000000e+00> : vector<8x128xf32>
    %45 = tpu.matmul %43, %41, %cst_10 {dimension_numbers = #tpu.dot_dimension_numbers<[1], [0], [0], [1], [0, 0, 1, 1], [], []>} : vector<8x256xf32>, vector<256x128xf32>, vector<8x128xf32> -> vector<8x128xf32>
    %cst_11 = arith.constant dense<0.000000e+00> : vector<8x128xf32>
    %46 = tpu.matmul %44, %41, %cst_11 {dimension_numbers = #tpu.dot_dimension_numbers<[1], [0], [0], [1], [0, 0, 1, 1], [], []>} : vector<8x256xf32>, vector<256x128xf32>, vector<8x128xf32> -> vector<8x128xf32>
    %47 = arith.addf %45, %46 : vector<8x128xf32>
    %48 = vector.broadcast %2 : f32 to vector<8x128xf32>
    %49 = arith.addf %47, %48 : vector<8x128xf32>
    %50 = arith.negf %49 : vector<8x128xf32>
    %51 = math.exp %50 : vector<8x128xf32>
    %cst_12 = arith.constant 1.000000e+00 : f32
    %52 = vector.broadcast %cst_12 : f32 to vector<8x128xf32>
    %53 = arith.addf %52, %51 : vector<8x128xf32>
    %54 = arith.divf %52, %53 : vector<8x128xf32>
    %c0_13 = arith.constant 0 : index
    %c0_14 = arith.constant 0 : index
    %55 = vector.load %arg3[%c0_13, %c0_14] : memref<8x128xf32, #tpu.memory_space<vmem>>, vector<8x128xf32>
    tpu.vector_store %arg3[%c0_13, %c0_14], %54 {strides = array<i32>} : memref<8x128xf32, #tpu.memory_space<vmem>>, vector<8x128xf32>,
    return
  }
  func.func @transform_0(%arg0: i32, %arg1: memref<3xf32, #tpu.memory_space<smem>>) -> (i32, i32) {
    %c0_i32 = arith.constant 0 : i32
    %c0_i32_0 = arith.constant 0 : i32
    return %arg0, %c0_i32 : i32, i32
  }
  func.func @transform_1(%arg0: i32, %arg1: memref<3xf32, #tpu.memory_space<smem>>) -> (i32, i32) {
    %c0_i32 = arith.constant 0 : i32
    %c0_i32_0 = arith.constant 0 : i32
    return %arg0, %c0_i32 : i32, i32
  }
}

</mosaic_0001>

<llo_original>
// kernel: net_forward.1
$region0: #{net_forward.1}
  #allocation0 [shape = 'u32[]', space=smem, size = 0x4, offset = 0x4, fixed_abs, tag = 'smem constant byte address 0x4 - core index']
  #allocation1 [shape = 'u32[144,128]{1,0:T(1,128)}', space=vmem, size = 0x12000, scoped, tag = 'internal scratch']
  #allocation2 [shape = 's32[1]{0}', space=sflag, size = 0x4, scoped, tag = 'scoped memory for net_forward.1']
  #allocation3 [shape = 'u8[512]{0}', space=smem, size = 0x200, scoped, tag = 'prefetched SMEM operand 0']
  %s0 = inlined_call_operand.vmem [shape: f32[3], index: 0, kind: input, shape index: {}]
  %s1 = inlined_call_operand.vmem [shape: f32[8,256], index: 1, kind: input, shape index: {}]
  %s2 = inlined_call_operand.vmem [shape: f32[8,128], index: 2, kind: output, shape index: {}]
  %s3 = sld [smem:[#allocation0]]
  $region14: #{net_forward.1} parent=0
    _
  %s5 = ssub.s32 1, %s3
  %s6 = scalar_select 0, %s5, %s3
  %s7 = sshll.u32 %s0, 4
  %s8 = int_to_ptr.vmem [resolvable:$true] %s7
  %10 = dma.vmem_to_smem %s8, 16, [#allocation3], [#allocation2]
  %11 = dma.done [#allocation2], 16
  %12 = sfence
  // Predicated region
  $region2: #{net_forward.1} parent=0 // pred_check
    _
  $region3: #{net_forward.1} parent=0 // pred_check_branch
    %14 = sbr.rel (0) target = $region5
  $region4: #{net_forward.1} parent=0 // pred_region
    _
  $region5: #{net_forward.1} parent=0 // pred_fallthru
    _
  %s15 = sld [smem:[#allocation3]]
  %s16 = sld [smem:[#allocation3 + $0x1]]
  %s17 = sld [smem:[#allocation3 + $0x2]]
  %v18 = vld [vmem:[%s1] sm:$0xff]
  %v19 = vld [vmem:[%s1 + $0x8] sm:$0xff]
  %v20 = vlaneseq
  %v21 = vand.u32 %v20, 127
  %v22 = vadd.s32 %v21, 128
  %vm23 = vcmp.lt.s32.totalorder %v21, 0
  %v24 = vsub.s32 0, %v21
  %v25 = vsel %vm23, %v24, %v21
  %v26 = vshrl.u32 %v25, 1
  %v27 = vand.u32 %v25, 1
  %v28 = vsub.s32 0, %v27
  %v29 = vsel %vm23, %v28, %v27
  %vm30 = vcmp.lt.s32.totalorder %v22, 0
  %v31 = vsub.s32 0, %v22
  %v32 = vsel %vm30, %v31, %v22
  %v33 = vshrl.u32 %v32, 1
  %v34 = vand.u32 %v32, 1
  %v35 = vsub.s32 0, %v34
  %v36 = vsel %vm30, %v35, %v34
  %vm37 = vcmp.ne.s32.totalorder %v29, 0
  %vm38 = vcmp.ne.s32.totalorder %v36, 0
  %vm39 = vcmp.lt.s32.totalorder %v29, 0
  %vm40 = vcmp.lt.s32.totalorder %v36, 0
  %vm41 = vmand %vm39, %vm37
  %vm42 = vmand %vm40, %vm38
  %v43 = vadd.s32 %v29, 2
  %v44 = vadd.s32 %v36, 2
  %v45 = vsel %vm41, %v43, %v29
  %v46 = vsel %vm42, %v44, %v36
  %vm47 = vcmp.eq.s32.totalorder %v45, 0
  %vm48 = vcmp.eq.s32.totalorder %v46, 0
  %v49 = vstv %s15
  %v50 = vstv %s16
  %v51 = vsel %vm47, %v49, %v50
  %v52 = vsel %vm48, %v49, %v50
  %v53 = vmul.f32 %v18, %v51
  %v54 = vmul.f32 %v19, %v52
  %v55 = vlaneseq
  %v56 = vshrl.u32 %v55, 7
  %v57 = vadd.s32 %v56, 8
  %v58 = vadd.s32 %v56, 16
  %v59 = vadd.s32 %v56, 24
  %v60 = vadd.s32 %v56, 32
  %v61 = vadd.s32 %v56, 40
  %v62 = vadd.s32 %v56, 48
  %v63 = vadd.s32 %v56, 56
  %v64 = vadd.s32 %v56, 64
  %v65 = vadd.s32 %v56, 72
  %v66 = vadd.s32 %v56, 80
  %v67 = vadd.s32 %v56, 88
  %v68 = vadd.s32 %v56, 96
  %v69 = vadd.s32 %v56, 104
  %v70 = vadd.s32 %v56, 112
  %v71 = vadd.s32 %v56, 120
  %v72 = vadd.s32 %v56, 128
  %v73 = vadd.s32 %v56, 136
  %v74 = vadd.s32 %v56, 144
  %v75 = vadd.s32 %v56, 152
  %v76 = vadd.s32 %v56, 160
  %v77 = vadd.s32 %v56, 168
  %v78 = vadd.s32 %v56, 176
  %v79 = vadd.s32 %v56, 184
  %v80 = vadd.s32 %v56, 192
  %v81 = vadd.s32 %v56, 200
  %v82 = vadd.s32 %v56, 208
  %v83 = vadd.s32 %v56, 216
  %v84 = vadd.s32 %v56, 224
  %v85 = vadd.s32 %v56, 232
  %v86 = vadd.s32 %v56, 240
  %v87 = vadd.s32 %v56, 248
  %v88 = vmul.u32 %v21, 2
  %vm89 = vcmp.eq.s32.totalorder %v56, %v88
  %vm90 = vcmp.eq.s32.totalorder %v57, %v88
  %vm91 = vcmp.eq.s32.totalorder %v58, %v88
  %vm92 = vcmp.eq.s32.totalorder %v59, %v88
  %vm93 = vcmp.eq.s32.totalorder %v60, %v88
  %vm94 = vcmp.eq.s32.totalorder %v61, %v88
  %vm95 = vcmp.eq.s32.totalorder %v62, %v88
  %vm96 = vcmp.eq.s32.totalorder %v63, %v88
  %vm97 = vcmp.eq.s32.totalorder %v64, %v88
  %vm98 = vcmp.eq.s32.totalorder %v65, %v88
  %vm99 = vcmp.eq.s32.totalorder %v66, %v88
  %vm100 = vcmp.eq.s32.totalorder %v67, %v88
  %vm101 = vcmp.eq.s32.totalorder %v68, %v88
  %vm102 = vcmp.eq.s32.totalorder %v69, %v88
  %vm103 = vcmp.eq.s32.totalorder %v70, %v88
  %vm104 = vcmp.eq.s32.totalorder %v71, %v88
  %vm105 = vcmp.eq.s32.totalorder %v72, %v88
  %vm106 = vcmp.eq.s32.totalorder %v73, %v88
  %vm107 = vcmp.eq.s32.totalorder %v74, %v88
  %vm108 = vcmp.eq.s32.totalorder %v75, %v88
  %vm109 = vcmp.eq.s32.totalorder %v76, %v88
  %vm110 = vcmp.eq.s32.totalorder %v77, %v88
  %vm111 = vcmp.eq.s32.totalorder %v78, %v88
  %vm112 = vcmp.eq.s32.totalorder %v79, %v88
  %vm113 = vcmp.eq.s32.totalorder %v80, %v88
  %vm114 = vcmp.eq.s32.totalorder %v81, %v88
  %vm115 = vcmp.eq.s32.totalorder %v82, %v88
  %vm116 = vcmp.eq.s32.totalorder %v83, %v88
  %vm117 = vcmp.eq.s32.totalorder %v84, %v88
  %vm118 = vcmp.eq.s32.totalorder %v85, %v88
  %vm119 = vcmp.eq.s32.totalorder %v86, %v88
  %vm120 = vcmp.eq.s32.totalorder %v87, %v88
  %v121 = vadd.s32 %v88, 1
  %vm122 = vcmp.eq.s32.totalorder %v56, %v121
  %vm123 = vcmp.eq.s32.totalorder %v57, %v121
  %vm124 = vcmp.eq.s32.totalorder %v58, %v121
  %vm125 = vcmp.eq.s32.totalorder %v59, %v121
  %vm126 = vcmp.eq.s32.totalorder %v60, %v121
  %vm127 = vcmp.eq.s32.totalorder %v61, %v121
  %vm128 = vcmp.eq.s32.totalorder %v62, %v121
  %vm129 = vcmp.eq.s32.totalorder %v63, %v121
  %vm130 = vcmp.eq.s32.totalorder %v64, %v121
  %vm131 = vcmp.eq.s32.totalorder %v65, %v121
  %vm132 = vcmp.eq.s32.totalorder %v66, %v121
  %vm133 = vcmp.eq.s32.totalorder %v67, %v121
  %vm134 = vcmp.eq.s32.totalorder %v68, %v121
  %vm135 = vcmp.eq.s32.totalorder %v69, %v121
  %vm136 = vcmp.eq.s32.totalorder %v70, %v121
  %vm137 = vcmp.eq.s32.totalorder %v71, %v121
  %vm138 = vcmp.eq.s32.totalorder %v72, %v121
  %vm139 = vcmp.eq.s32.totalorder %v73, %v121
  %vm140 = vcmp.eq.s32.totalorder %v74, %v121
  %vm141 = vcmp.eq.s32.totalorder %v75, %v121
  %vm142 = vcmp.eq.s32.totalorder %v76, %v121
  %vm143 = vcmp.eq.s32.totalorder %v77, %v121
  %vm144 = vcmp.eq.s32.totalorder %v78, %v121
  %vm145 = vcmp.eq.s32.totalorder %v79, %v121
  %vm146 = vcmp.eq.s32.totalorder %v80, %v121
  %vm147 = vcmp.eq.s32.totalorder %v81, %v121
  %vm148 = vcmp.eq.s32.totalorder %v82, %v121
  %vm149 = vcmp.eq.s32.totalorder %v83, %v121
  %vm150 = vcmp.eq.s32.totalorder %v84, %v121
  %vm151 = vcmp.eq.s32.totalorder %v85, %v121
  %vm152 = vcmp.eq.s32.totalorder %v86, %v121
  %vm153 = vcmp.eq.s32.totalorder %v87, %v121
  %vm154 = vmor %vm89, %vm122
  %vm155 = vmor %vm90, %vm123
  %vm156 = vmor %vm91, %vm124
  %vm157 = vmor %vm92, %vm125
  %vm158 = vmor %vm93, %vm126
  %vm159 = vmor %vm94, %vm127
  %vm160 = vmor %vm95, %vm128
  %vm161 = vmor %vm96, %vm129
  %vm162 = vmor %vm97, %vm130
  %vm163 = vmor %vm98, %vm131
  %vm164 = vmor %vm99, %vm132
  %vm165 = vmor %vm100, %vm133
  %vm166 = vmor %vm101, %vm134
  %vm167 = vmor %vm102, %vm135
  %vm168 = vmor %vm103, %vm136
  %vm169 = vmor %vm104, %vm137
  %vm170 = vmor %vm105, %vm138
  %vm171 = vmor %vm106, %vm139
  %vm172 = vmor %vm107, %vm140
  %vm173 = vmor %vm108, %vm141
  %vm174 = vmor %vm109, %vm142
  %vm175 = vmor %vm110, %vm143
  %vm176 = vmor %vm111, %vm144
  %vm177 = vmor %vm112, %vm145
  %vm178 = vmor %vm113, %vm146
  %vm179 = vmor %vm114, %vm147
  %vm180 = vmor %vm115, %vm148
  %vm181 = vmor %vm116, %vm149
  %vm182 = vmor %vm117, %vm150
  %vm183 = vmor %vm118, %vm151
  %vm184 = vmor %vm119, %vm152
  %vm185 = vmor %vm120, %vm153
  %v186 = vsel %vm154, 1.0, 0.0
  %v187 = vsel %vm155, 1.0, 0.0
  %v188 = vsel %vm156, 1.0, 0.0
  %v189 = vsel %vm157, 1.0, 0.0
  %v190 = vsel %vm158, 1.0, 0.0
  %v191 = vsel %vm159, 1.0, 0.0
  %v192 = vsel %vm160, 1.0, 0.0
  %v193 = vsel %vm161, 1.0, 0.0
  %v194 = vsel %vm162, 1.0, 0.0
  %v195 = vsel %vm163, 1.0, 0.0
  %v196 = vsel %vm164, 1.0, 0.0
  %v197 = vsel %vm165, 1.0, 0.0
  %v198 = vsel %vm166, 1.0, 0.0
  %v199 = vsel %vm167, 1.0, 0.0
  %v200 = vsel %vm168, 1.0, 0.0
  %v201 = vsel %vm169, 1.0, 0.0
  %v202 = vsel %vm170, 1.0, 0.0
  %v203 = vsel %vm171, 1.0, 0.0
  %v204 = vsel %vm172, 1.0, 0.0
  %v205 = vsel %vm173, 1.0, 0.0
  %v206 = vsel %vm174, 1.0, 0.0
  %v207 = vsel %vm175, 1.0, 0.0
  %v208 = vsel %vm176, 1.0, 0.0
  %v209 = vsel %vm177, 1.0, 0.0
  %v210 = vsel %vm178, 1.0, 0.0
  %v211 = vsel %vm179, 1.0, 0.0
  %v212 = vsel %vm180, 1.0, 0.0
  %v213 = vsel %vm181, 1.0, 0.0
  %v214 = vsel %vm182, 1.0, 0.0
  %v215 = vsel %vm183, 1.0, 0.0
  %v216 = vsel %vm184, 1.0, 0.0
  %v217 = vsel %vm185, 1.0, 0.0
  %v218 = vpack.c.bf16 %v53, %v53
  %v219 = vpack.c.bf16 %v54, %v54
  %v220 = vunpack.c.l.bf16 %v218
  %v221 = vunpack.c.l.bf16 %v219
  %v222 = vsub.f32 %v53, %v220
  %v223 = vsub.f32 %v54, %v221
  %224 = vmatprep.subr.mxu0 0.0
  %225 = vmatpush1.msra.mxu0 %v186
  %226 = vmatprep.subr.mxu0 0.0
  %227 = vmatpush1.msra.mxu0 %v187
  %228 = vmatprep.subr.mxu0 0.0
  %229 = vmatpush1.msra.mxu0 %v188
  %230 = vmatprep.subr.mxu0 0.0
  %231 = vmatpush1.msra.mxu0 %v189
  %232 = vmatprep.subr.mxu0 0.0
  %233 = vmatpush1.msra.mxu0 %v190
  %234 = vmatprep.subr.mxu0 0.0
  %235 = vmatpush1.msra.mxu0 %v191
  %236 = vmatprep.subr.mxu0 0.0
  %237 = vmatpush1.msra.mxu0 %v192
  %238 = vmatprep.subr.mxu0 0.0
  %239 = vmatpush1.msra.mxu0 %v193
  %240 = vmatprep.subr.mxu0 0.0
  %241 = vmatpush1.msra.mxu0 %v194
  %242 = vmatprep.subr.mxu0 0.0
  %243 = vmatpush1.msra.mxu0 %v195
  %244 = vmatprep.subr.mxu0 0.0
  %245 = vmatpush1.msra.mxu0 %v196
  %246 = vmatprep.subr.mxu0 0.0
  %247 = vmatpush1.msra.mxu0 %v197
  %248 = vmatprep.subr.mxu0 0.0
  %249 = vmatpush1.msra.mxu0 %v198
  %250 = vmatprep.subr.mxu0 0.0
  %251 = vmatpush1.msra.mxu0 %v199
  %252 = vmatprep.subr.mxu0 0.0
  %253 = vmatpush1.msra.mxu0 %v200
  %254 = vmatprep.subr.mxu0 0.0
  %255 = vmatpush1.msra.mxu0 %v201
  %256 = vmatprep.subr.mxu0 0.0
  %257 = vmatpush1.msra.mxu0 %v202
  %258 = vmatprep.subr.mxu0 0.0
  %259 = vmatpush1.msra.mxu0 %v203
  %260 = vmatprep.subr.mxu0 0.0
  %261 = vmatpush1.msra.mxu0 %v204
  %262 = vmatprep.subr.mxu0 0.0
  %263 = vmatpush1.msra.mxu0 %v205
  %264 = vmatprep.subr.mxu0 0.0
  %265 = vmatpush1.msra.mxu0 %v206
  %266 = vmatprep.subr.mxu0 0.0
  %267 = vmatpush1.msra.mxu0 %v207
  %268 = vmatprep.subr.mxu0 0.0
  %269 = vmatpush1.msra.mxu0 %v208
  %270 = vmatprep.subr.mxu0 0.0
  %271 = vmatpush1.msra.mxu0 %v209
  %272 = vmatprep.subr.mxu0 0.0
  %273 = vmatpush1.msra.mxu0 %v210
  %274 = vmatprep.subr.mxu0 0.0
  %275 = vmatpush1.msra.mxu0 %v211
  %276 = vmatprep.subr.mxu0 0.0
  %277 = vmatpush1.msra.mxu0 %v212
  %278 = vmatprep.subr.mxu0 0.0
  %279 = vmatpush1.msra.mxu0 %v213
  %280 = vmatprep.subr.mxu0 0.0
  %281 = vmatpush1.msra.mxu0 %v214
  %282 = vmatprep.subr.mxu0 0.0
  %283 = vmatpush1.msra.mxu0 %v215
  %284 = vmatprep.subr.mxu0 0.0
  %285 = vmatpush1.msra.mxu0 %v216
  %286 = vmatprep.subr.mxu0 0.0
  %287 = vmatpush1.msra.mxu0 %v217
  %288 = vmatprep.mubr.f32.mxu0 %v223
  %289 = vmatmul.mubr.f32.gmra.mrb[0].mxu0 %v222
  %v290 = vpop.f32.mrb[0].mxu0
  %v291 = vadd.f32 0.0, %v290
  %v292 = vpop.f32.mrb[0].mxu0
  %293 = vdwg.mxu0
  %294 = vmatprep.subr.mxu0 0.0
  %295 = vmatpush1.msra.mxu0 %v186
  %296 = vmatprep.subr.mxu0 0.0
  %297 = vmatpush1.msra.mxu0 %v187
  %298 = vmatprep.subr.mxu0 0.0
  %299 = vmatpush1.msra.mxu0 %v188
  %300 = vmatprep.subr.mxu0 0.0
  %301 = vmatpush1.msra.mxu0 %v189
  %302 = vmatprep.subr.mxu0 0.0
  %303 = vmatpush1.msra.mxu0 %v190
  %304 = vmatprep.subr.mxu0 0.0
  %305 = vmatpush1.msra.mxu0 %v191
  %306 = vmatprep.subr.mxu0 0.0
  %307 = vmatpush1.msra.mxu0 %v192
  %308 = vmatprep.subr.mxu0 0.0
  %309 = vmatpush1.msra.mxu0 %v193
  %310 = vmatprep.subr.mxu0 0.0
  %311 = vmatpush1.msra.mxu0 %v194
  %312 = vmatprep.subr.mxu0 0.0
  %313 = vmatpush1.msra.mxu0 %v195
  %314 = vmatprep.subr.mxu0 0.0
  %315 = vmatpush1.msra.mxu0 %v196
  %316 = vmatprep.subr.mxu0 0.0
  %317 = vmatpush1.msra.mxu0 %v197
  %318 = vmatprep.subr.mxu0 0.0
  %319 = vmatpush1.msra.mxu0 %v198
  %320 = vmatprep.subr.mxu0 0.0
  %321 = vmatpush1.msra.mxu0 %v199
  %322 = vmatprep.subr.mxu0 0.0
  %323 = vmatpush1.msra.mxu0 %v200
  %324 = vmatprep.subr.mxu0 0.0
  %325 = vmatpush1.msra.mxu0 %v201
  %326 = vmatprep.subr.mxu0 0.0
  %327 = vmatpush1.msra.mxu0 %v202
  %328 = vmatprep.subr.mxu0 0.0
  %329 = vmatpush1.msra.mxu0 %v203
  %330 = vmatprep.subr.mxu0 0.0
  %331 = vmatpush1.msra.mxu0 %v204
  %332 = vmatprep.subr.mxu0 0.0
  %333 = vmatpush1.msra.mxu0 %v205
  %334 = vmatprep.subr.mxu0 0.0
  %335 = vmatpush1.msra.mxu0 %v206
  %336 = vmatprep.subr.mxu0 0.0
  %337 = vmatpush1.msra.mxu0 %v207
  %338 = vmatprep.subr.mxu0 0.0
  %339 = vmatpush1.msra.mxu0 %v208
  %340 = vmatprep.subr.mxu0 0.0
  %341 = vmatpush1.msra.mxu0 %v209
  %342 = vmatprep.subr.mxu0 0.0
  %343 = vmatpush1.msra.mxu0 %v210
  %344 = vmatprep.subr.mxu0 0.0
  %345 = vmatpush1.msra.mxu0 %v211
  %346 = vmatprep.subr.mxu0 0.0
  %347 = vmatpush1.msra.mxu0 %v212
  %348 = vmatprep.subr.mxu0 0.0
  %349 = vmatpush1.msra.mxu0 %v213
  %350 = vmatprep.subr.mxu0 0.0
  %351 = vmatpush1.msra.mxu0 %v214
  %352 = vmatprep.subr.mxu0 0.0
  %353 = vmatpush1.msra.mxu0 %v215
  %354 = vmatprep.subr.mxu0 0.0
  %355 = vmatpush1.msra.mxu0 %v216
  %356 = vmatprep.subr.mxu0 0.0
  %357 = vmatpush1.msra.mxu0 %v217
  %358 = vmatprep.mubr.f32.mxu0 %v221
  %359 = vmatmul.mubr.f32.gmra.mrb[0].mxu0 %v220
  %v360 = vpop.f32.mrb[0].mxu0
  %v361 = vadd.f32 %v291, %v360
  %v362 = vpop.f32.mrb[0].mxu0
  %363 = vdwg.mxu0
  %v364 = vstv %s17
  %v365 = vadd.f32 %v361, %v364
  %v366 = vxor.u32 %v365, 2147483648
  %v367 = vmul.f32 %v366, 1.442695
  %v368 = vpow.pop %v367
  %v369 = vadd.f32 %v368, 1.0
  %v370 = vrcp.pop %v369
  %v371 = vmul.f32 1.0, %v370
  %372 = vst [vmem:[%s2] sm:$0xff] %v371
  // Predicated region
  $region6: #{net_forward.1} parent=0 // pred_check
    _
  $region7: #{net_forward.1} parent=0 // pred_check_branch
    %374 = sbr.rel (0) target = $region9
  $region8: #{net_forward.1} parent=0 // pred_region
    _
  $region9: #{net_forward.1} parent=0 // pred_fallthru
    _
  // Predicated region
  $region10: #{net_forward.1} parent=0 // pred_check
    _
  $region11: #{net_forward.1} parent=0 // pred_check_branch
    %376 = sbr.rel (0) target = $region13
  $region12: #{net_forward.1} parent=0 // pred_region
    _
  $region13: #{net_forward.1} parent=0 // pred_fallthru
    _

</llo_original>
